<compile_context>
chip_gen: v7x
topology: tpu7x:2x2x1
jax: 0.10.0
libtpu: 0.0.40
codegen_flags: <defaults>
</compile_context>

<pallas_src>
import math
import functools

import numpy as np
import jax
import jax.numpy as jnp
from jax.experimental import pallas as pl
from jax.experimental.pallas import tpu as pltpu


# ----------------------------------------------------------------------------
# Parameter / buffer setup (glue, plain numpy -> jnp). Reproduces exactly:
#   pe[pos, i]   = sin(pos / 10000 ** (2*i/d_model))        for even i
#   pe[pos, i+1] = cos(pos / 10000 ** (2*(i+1)/d_model))
# ----------------------------------------------------------------------------
def build_pe_table(d_model: int, max_seq_len: int = 300) -> jnp.ndarray:
    pe = np.zeros((max_seq_len, d_model), dtype=np.float64)
    pos = np.arange(max_seq_len, dtype=np.float64)[:, None]
    i_even = np.arange(0, d_model, 2, dtype=np.float64)[None, :]
    pe[:, 0::2] = np.sin(pos / np.power(10000.0, 2.0 * i_even / d_model))
    pe[:, 1::2] = np.cos(pos / np.power(10000.0, 2.0 * (i_even + 1.0) / d_model))
    return jnp.asarray(pe, dtype=jnp.float32)


# ----------------------------------------------------------------------------
# Pallas kernels (hot path: scale + broadcast-add PE [+ dropout select])
# ----------------------------------------------------------------------------
def _pe_eval_kernel(x_ref, pe_ref, o_ref, *, scale):
    # x_ref / o_ref: (Bt, S, D) batch tile; pe_ref: (S, D), resident.
    o_ref[...] = (x_ref[...] * scale + pe_ref[...][None, :, :]).astype(o_ref.dtype)


def _pe_train_kernel(x_ref, pe_ref, bits_ref, o_ref, *, scale_over_keep, threshold):
    # pe_ref is already pre-scaled by 1/(1-p); scale_over_keep = sqrt(D)/(1-p),
    # so the kept value is (x*sqrt(D) + pe)/(1-p) with one multiply per element.
    y = x_ref[...] * scale_over_keep + pe_ref[...][None, :, :]
    keep = bits_ref[...] >= jnp.uint32(threshold)       # P(keep) = 1 - p
    o_ref[...] = jnp.where(keep, y, 0.0).astype(o_ref.dtype)


# ----------------------------------------------------------------------------
# Wrapper
# ----------------------------------------------------------------------------
_VMEM_BUDGET_BYTES = 12 * 1024 * 1024   # conservative: fits default scoped VMEM
                                        # on v5e (16 MiB) / v6e (32 MiB) / v7x (32 MiB)


def _pick_batch_tile(B, S, D, itemsize, *, with_bits):
    # double-buffered x + out (+ uint32 bits in training) per grid step
    extra = 4 if with_bits else 0
    bytes_per_batch_row = S * D * (2 * itemsize + extra)
    bt = _VMEM_BUDGET_BYTES // (2 * max(bytes_per_batch_row, 1))
    return int(max(1, min(B, bt)))


def positional_encoder(x, pe_table, *, dropout: float = 0.1,
                       training: bool = False, seed: int = 0):
    B, S, D = x.shape
    assert D == pe_table.shape[1], "d_model mismatch"
    assert S <= pe_table.shape[0], "seq_len exceeds max_seq_len"
    pe = pe_table[:S, :]
    scale = math.sqrt(float(D))
    itemsize = jnp.dtype(x.dtype).itemsize

    apply_dropout = training and dropout > 0.0
    bt = _pick_batch_tile(B, S, D, itemsize, with_bits=apply_dropout)
    grid = (pl.cdiv(B, bt),)

    # Block last-two dims equal the full array dims -> always layout-legal.
    x_spec = pl.BlockSpec((bt, S, D), lambda b: (b, 0, 0))
    pe_spec = pl.BlockSpec((S, D), lambda b: (0, 0))       # resident, fetched once
    out_spec = pl.BlockSpec((bt, S, D), lambda b: (b, 0, 0))
    out_shape = jax.ShapeDtypeStruct((B, S, D), x.dtype)
    cparams = pltpu.CompilerParams(dimension_semantics=("parallel",))

    if not apply_dropout:
        kernel = functools.partial(_pe_eval_kernel, scale=scale)
        return pl.pallas_call(
            kernel,
            out_shape=out_shape,
            grid=grid,
            in_specs=[x_spec, pe_spec],
            out_specs=out_spec,
            compiler_params=cparams,
        )(x, pe)

    rate = float(dropout)
    inv_keep = 1.0 / (1.0 - rate)
    threshold = min(int(round(rate * 2.0 ** 32)), 2 ** 32 - 1)

    # TODO(synk): in-kernel pltpu.prng_random_bits would avoid streaming the
    # mask from HBM, but it does not lower under CPU interpret mode; the bits
    # are generated once per call with jax.random and tiled like x instead.
    bits = jax.random.bits(jax.random.PRNGKey(seed), (B, S, D), dtype=jnp.uint32)
    pe_scaled = pe * jnp.asarray(inv_keep, dtype=pe.dtype)   # fold 1/(1-p) once
    bits_spec = pl.BlockSpec((bt, S, D), lambda b: (b, 0, 0))

    kernel = functools.partial(_pe_train_kernel,
                               scale_over_keep=scale * inv_keep,
                               threshold=threshold)
    return pl.pallas_call(
        kernel,
        out_shape=out_shape,
        grid=grid,
        in_specs=[x_spec, pe_spec, bits_spec],
        out_specs=out_spec,
        compiler_params=cparams,
    )(x, pe_scaled, bits)


# ----------------------------------------------------------------------------
# Demo / self-check
# ----------------------------------------------------------------------------
if __name__ == "__main__":
    d_model = 128
    max_seq_len = 300
    batch, seq_len = 2, 8

    pe_table = build_pe_table(d_model, max_seq_len)

    key = jax.random.PRNGKey(0)
    x = jax.random.normal(key, (batch, seq_len, d_model), dtype=jnp.float32)

    # Reference (pure JAX/numpy) for the deterministic part.
    ref = np.asarray(x * math.sqrt(d_model) + pe_table[None, :seq_len, :])

    # Eval mode (dropout == identity): deterministic, check against reference.
    y = jax.block_until_ready(
        positional_encoder(x, pe_table, dropout=0.1, training=False))
    assert np.allclose(np.asarray(y), ref, rtol=1e-5, atol=1e-5), \
        "eval-mode output mismatch"

    # Training mode (inverted dropout): kept entries must equal ref/(1-p),
    # dropped entries must be exactly zero.
    p = 0.1
    y_train = jax.block_until_ready(
        positional_encoder(x, pe_table, dropout=p, training=True, seed=1234))
    y_train = np.asarray(y_train)
    assert y_train.shape == x.shape
    kept = y_train != 0.0
    expected = ref / (1.0 - p)
    assert np.allclose(y_train[kept], expected[kept], rtol=1e-4, atol=1e-4), \
        "training-mode kept values mismatch"

    print("KERNEL_OK")
</pallas_src>

<mosaic_0001>
module attributes {stable_mosaic.version = 11 : i64} {
  func.func @_pe_eval_kernel(%arg0: i32, %arg1: memref<2x8x128xf32, #tpu.memory_space<vmem>>, %arg2: memref<8x128xf32, #tpu.memory_space<vmem>>, %arg3: memref<2x8x128xf32, #tpu.memory_space<vmem>>) attributes {dimension_semantics = [#tpu.dimension_semantics<parallel>], iteration_bounds = array<i64: 1>, scalar_prefetch = 0 : i64, scratch_operands = 0 : i64, tpu.core_type = #tpu.core_type<tc>, window_params = [{transform_indices = @transform_0, window_bounds = array<i64: 2, 8, 128>}, {pipeline_mode = #tpu.pipeline_mode<synchronous>, transform_indices = @transform_1, window_bounds = array<i64: 8, 128>}, {transform_indices = @transform_2, window_bounds = array<i64: 2, 8, 128>}]} {
    %c0 = arith.constant 0 : index
    %c0_0 = arith.constant 0 : index
    %c0_1 = arith.constant 0 : index
    %0 = vector.load %arg1[%c0, %c0_0, %c0_1] : memref<2x8x128xf32, #tpu.memory_space<vmem>>, vector<2x8x128xf32>
    %cst = arith.constant 11.3137083 : f32
    %1 = vector.broadcast %cst : f32 to vector<2x8x128xf32>
    %2 = arith.mulf %0, %1 : vector<2x8x128xf32>
    %c0_2 = arith.constant 0 : index
    %c0_3 = arith.constant 0 : index
    %3 = vector.load %arg2[%c0_2, %c0_3] : memref<8x128xf32, #tpu.memory_space<vmem>>, vector<8x128xf32>
    %4 = vector.shape_cast %3 : vector<8x128xf32> to vector<1x8x128xf32>
    %5 = vector.broadcast %4 : vector<1x8x128xf32> to vector<2x8x128xf32>
    %6 = arith.addf %2, %5 : vector<2x8x128xf32>
    %c0_4 = arith.constant 0 : index
    %c0_5 = arith.constant 0 : index
    %c0_6 = arith.constant 0 : index
    %7 = vector.load %arg3[%c0_4, %c0_5, %c0_6] : memref<2x8x128xf32, #tpu.memory_space<vmem>>, vector<2x8x128xf32>
    tpu.vector_store %arg3[%c0_4, %c0_5, %c0_6], %6 {strides = array<i32>} : memref<2x8x128xf32, #tpu.memory_space<vmem>>, vector<2x8x128xf32>,
    return
  }
  func.func @transform_0(%arg0: i32) -> (i32, i32, i32) {
    %c0_i32 = arith.constant 0 : i32
    %c0_i32_0 = arith.constant 0 : i32
    %c0_i32_1 = arith.constant 0 : i32
    return %arg0, %c0_i32, %c0_i32_0 : i32, i32, i32
  }
  func.func @transform_1(%arg0: i32) -> (i32, i32) {
    %c0_i32 = arith.constant 0 : i32
    %c0_i32_0 = arith.constant 0 : i32
    %c0_i32_1 = arith.constant 0 : i32
    return %c0_i32, %c0_i32_0 : i32, i32
  }
  func.func @transform_2(%arg0: i32) -> (i32, i32, i32) {
    %c0_i32 = arith.constant 0 : i32
    %c0_i32_0 = arith.constant 0 : i32
    %c0_i32_1 = arith.constant 0 : i32
    return %arg0, %c0_i32, %c0_i32_0 : i32, i32, i32
  }
}

</mosaic_0001>

<llo_original>
// kernel: tpu_custom_call.1
$region0: #{tpu_custom_call.1}
  #allocation0 [shape = 'u32[]', space=smem, size = 0x4, offset = 0x4, fixed_abs, tag = 'smem constant byte address 0x4 - core index']
  #allocation1 [shape = 'u32[144,128]{1,0:T(1,128)}', space=vmem, size = 0x12000, scoped, tag = 'internal scratch']
  %s0 = inlined_call_operand.hbm [shape: f32[2,8,128], index: 0, kind: input, shape index: {}]
  %s1 = inlined_call_operand.hbm [shape: f32[8,128], index: 1, kind: input, shape index: {}]
  %s2 = inlined_call_operand.hbm [shape: f32[2,8,128], index: 2, kind: output, shape index: {}]
  %s3 = sld [smem:[#allocation0]]
  $region26: #{tpu_custom_call.1} parent=0
    _
  %s5 = ssub.s32 1, %s3
  %s6 = scalar_select 0, %s5, %s3
  $region1: #{tpu_custom_call.1} parent=0
    #allocation2 [shape = 'u8[8192]{0}', space=vmem, size = 0x2000, scoped, tag = 'input window, operand 0, single buffered']
    #allocation3 [shape = 's32[1]{0}', space=sflag, size = 0x4, scoped, tag = 'scoped memory for tpu_custom_call.1']
    #allocation4 [shape = 's32[1]{0}', space=sflag, size = 0x4, scoped, tag = 'scoped memory for tpu_custom_call.1']
    #allocation5 [shape = 'u8[4096]{0}', space=vmem, size = 0x1000, scoped, tag = 'input window, operand 1, single buffered']
    #allocation6 [shape = 's32[1]{0}', space=sflag, size = 0x4, scoped, tag = 'scoped memory for tpu_custom_call.1']
    #allocation7 [shape = 'u8[8192]{0}', space=vmem, size = 0x2000, scoped, tag = 'output window, operand 0, single buffered']
    %7 = vsyncpa [#allocation3], 0
    %8 = vsyncpa [#allocation6], 0
    %9 = vsyncpa [#allocation4], 0
    // Predicated region
    $region2: #{tpu_custom_call.1} parent=1 // pred_check
      _
    $region3: #{tpu_custom_call.1} parent=1 // pred_check_branch
      %11 = sbr.rel (0) target = $region5
    $region4: #{tpu_custom_call.1} parent=1 // pred_region
      %s13 = ssub.s32 256, 256
      %14 = vsyncadd [#allocation3], %s13
      %s15 = sshll.u32 [#allocation2], 4
      %s16 = int_to_ptr.vmem [resolvable:$true] %s15
      %21 = dma.hbm_to_vmem [thread:$0]  %s0, 256, %s16, [#allocation3], 128, 128, 8
    $region5: #{tpu_custom_call.1} parent=1 // pred_fallthru
      _
    // Predicated region
    $region6: #{tpu_custom_call.1} parent=1 // pred_check
      _
    $region7: #{tpu_custom_call.1} parent=1 // pred_check_branch
      %23 = sbr.rel (0) target = $region9
    $region8: #{tpu_custom_call.1} parent=1 // pred_region
      %s25 = ssub.s32 128, 128
      %26 = vsyncadd [#allocation6], %s25
      %s28 = sshll.u32 [#allocation5], 4
      %s29 = int_to_ptr.vmem [resolvable:$true] %s28
      %31 = dma.hbm_to_vmem [thread:$0]  %s1, 128, %s29, [#allocation6]
    $region9: #{tpu_custom_call.1} parent=1 // pred_fallthru
      _
    // Predicated region
    $region10: #{tpu_custom_call.1} parent=1 // pred_check
      _
    $region11: #{tpu_custom_call.1} parent=1 // pred_check_branch
      %33 = sbr.rel (0) target = $region13
    $region12: #{tpu_custom_call.1} parent=1 // pred_region
      %34 = dma.done [#allocation3], 256
    $region13: #{tpu_custom_call.1} parent=1 // pred_fallthru
      _
    // Predicated region
    $region14: #{tpu_custom_call.1} parent=1 // pred_check
      _
    $region15: #{tpu_custom_call.1} parent=1 // pred_check_branch
      %36 = sbr.rel (0) target = $region17
    $region16: #{tpu_custom_call.1} parent=1 // pred_region
      %37 = dma.done [#allocation6], 128
    $region17: #{tpu_custom_call.1} parent=1 // pred_fallthru
      _
    %v38 = vld [vmem:[#allocation2] sm:$0xff]
    %v39 = vld [vmem:[#allocation2 + $0x8] sm:$0xff]
    %v40 = vmul.f32 %v38, 11.313708
    %v41 = vmul.f32 %v39, 11.313708
    %v42 = vld [vmem:[#allocation5] sm:$0xff]
    %v43 = vadd.f32 %v40, %v42
    %v44 = vadd.f32 %v41, %v42
    %45 = vst [vmem:[#allocation7] sm:$0xff] %v43
    %46 = vst [vmem:[#allocation7 + $0x8] sm:$0xff] %v44
    // Predicated region
    $region18: #{tpu_custom_call.1} parent=1 // pred_check
      _
    $region19: #{tpu_custom_call.1} parent=1 // pred_check_branch
      %48 = sbr.rel (0) target = $region21
    $region20: #{tpu_custom_call.1} parent=1 // pred_region
      %s50 = ssub.s32 256, 256
      %51 = vsyncadd [#allocation4], %s50
      %s52 = sshll.u32 [#allocation7], 4
      %s53 = int_to_ptr.vmem [resolvable:$true] %s52
      %58 = dma.vmem_to_hbm [thread:$0]  %s53, 256, %s2, [#allocation4], 128, 128, 8
    $region21: #{tpu_custom_call.1} parent=1 // pred_fallthru
      _
    // Predicated region
    $region22: #{tpu_custom_call.1} parent=1 // pred_check
      _
    $region23: #{tpu_custom_call.1} parent=1 // pred_check_branch
      %60 = sbr.rel (0) target = $region25
    $region24: #{tpu_custom_call.1} parent=1 // pred_region
      %61 = dma.done [#allocation4], 256
    $region25: #{tpu_custom_call.1} parent=1 // pred_fallthru
      _
    %62 = vsyncpa [#allocation3], 1
    %63 = vsyncpa [#allocation6], 1
    %64 = vsyncpa [#allocation4], 1

</llo_original>
